<compile_context>
chip_gen: v7x
topology: tpu7x:2x2x1
jax: 0.10.0
libtpu: 0.0.40
codegen_flags: <defaults>
</compile_context>

<pallas_src>
import jax
import jax.numpy as jnp
from jax.experimental import pallas as pl
from jax.experimental.pallas import tpu as pltpu

EMB_DIM = 256
COND_DIM = 128


def _cond_augment_kernel(x_ref, w_ref, b_ref, noise_ref,
                         cond_ref, mean_ref, sigma_ref):
    # Linear (bf16 MXU matmul, f32 accumulation) + bias + ReLU, all in f32.
    y = jnp.dot(x_ref[...], w_ref[...], preferred_element_type=jnp.float32)
    y = jnp.maximum(y + b_ref[...], 0.0)               # b_ref is (1, 2*COND_DIM)

    # 128-lane slices land exactly on vreg boundaries.
    mean = y[:, :COND_DIM]
    sigma = y[:, COND_DIM:]
    mean_ref[...] = mean.astype(mean_ref.dtype)
    sigma_ref[...] = sigma.astype(sigma_ref.dtype)

    # Reparameterization: condition = exp(0.5 * sigma) * eps + mean  (f32 math,
    # exp goes to the EUP so it is effectively free next to the mem traffic).
    eps = noise_ref[...].astype(jnp.float32)
    cond = jnp.exp(sigma * 0.5) * eps + mean
    cond_ref[...] = cond.astype(cond_ref.dtype)


def cond_augment_forward(x, w, b, noise, *, tile_b=512, out_dtype=jnp.float32):
    """x: [B, EMB_DIM]; w: [EMB_DIM, 2*COND_DIM]; b: [2*COND_DIM]; noise: [B, COND_DIM].

    Returns (condition, mean, sigma), each [B, COND_DIM] of out_dtype.
    """
    B = x.shape[0]

    # Small batch: one grid step whose block equals the full batch -> no padding,
    # no wasted rows, and the (8,128) block constraint is trivially satisfied
    # because the block spans the full dim.
    if B <= tile_b:
        tile_b = B
    n_tiles = pl.cdiv(B, tile_b)
    # Ragged final block (B % tile_b != 0) is handled by Pallas partial-block
    # masking -- no jnp.pad pass over x / noise.

    # bf16 activations / weights / noise on the HBM + MXU path; f32 epilogue.
    x_bf = x.astype(jnp.bfloat16)
    w_bf = w.astype(jnp.bfloat16)
    n_bf = noise.astype(jnp.bfloat16)
    b2d = b.astype(jnp.float32).reshape(1, 2 * COND_DIM)

    out_bytes = jnp.dtype(out_dtype).itemsize
    cost = pl.CostEstimate(
        flops=2 * B * EMB_DIM * 2 * COND_DIM,
        transcendentals=B * COND_DIM,
        bytes_accessed=(B * EMB_DIM * 2                  # x (bf16)
                        + EMB_DIM * 2 * COND_DIM * 2     # W (bf16, resident)
                        + 2 * COND_DIM * 4               # bias (f32)
                        + B * COND_DIM * 2               # noise (bf16)
                        + 3 * B * COND_DIM * out_bytes),  # cond / mean / sigma
    )

    out_shapes = tuple(
        jax.ShapeDtypeStruct((B, COND_DIM), out_dtype) for _ in range(3))

    cond, mean, sigma = pl.pallas_call(
        _cond_augment_kernel,
        out_shape=out_shapes,
        grid=(n_tiles,),
        in_specs=[
            pl.BlockSpec((tile_b, EMB_DIM), lambda i: (i, 0)),        # x tile
            pl.BlockSpec((EMB_DIM, 2 * COND_DIM), lambda i: (0, 0)),  # W (resident)
            pl.BlockSpec((1, 2 * COND_DIM), lambda i: (0, 0)),        # bias (resident)
            pl.BlockSpec((tile_b, COND_DIM), lambda i: (i, 0)),       # noise tile
        ],
        out_specs=(
            pl.BlockSpec((tile_b, COND_DIM), lambda i: (i, 0)),       # condition
            pl.BlockSpec((tile_b, COND_DIM), lambda i: (i, 0)),       # mean
            pl.BlockSpec((tile_b, COND_DIM), lambda i: (i, 0)),       # sigma
        ),
        compiler_params=pltpu.CompilerParams(
            dimension_semantics=("parallel",)),
        cost_estimate=cost,
    )(x_bf, w_bf, b2d, n_bf)

    return cond, mean, sigma


def _reference(x, w, b, noise):
    # Mirrors the kernel's numerics: bf16 matmul inputs / bf16 noise,
    # f32 accumulation and epilogue.
    xb = x.astype(jnp.bfloat16)
    wb = w.astype(jnp.bfloat16)
    y = jnp.dot(xb, wb, preferred_element_type=jnp.float32) + b.astype(jnp.float32)
    y = jnp.maximum(y, 0.0)
    mean, sigma = y[:, :COND_DIM], y[:, COND_DIM:]
    eps = noise.astype(jnp.bfloat16).astype(jnp.float32)
    cond = jnp.exp(0.5 * sigma) * eps + mean
    return cond, mean, sigma


if __name__ == "__main__":
    key = jax.random.PRNGKey(0)
    k_x, k_w, k_b, k_n = jax.random.split(key, 4)

    B = 24  # small demo batch; kernel scales with the batch grid for large B
    x = jax.random.normal(k_x, (B, EMB_DIM), dtype=jnp.float32)

    # Deterministic "init" of the Linear(256 -> 256) parameters
    # (PyTorch default uniform(-1/sqrt(fan_in), 1/sqrt(fan_in))).
    bound = 1.0 / jnp.sqrt(jnp.float32(EMB_DIM))
    w = jax.random.uniform(k_w, (EMB_DIM, 2 * COND_DIM),
                           minval=-bound, maxval=bound, dtype=jnp.float32)
    b = jax.random.uniform(k_b, (2 * COND_DIM,),
                           minval=-bound, maxval=bound, dtype=jnp.float32)

    # Standard-normal noise (torch.FloatTensor(...).normal_() equivalent),
    # sampled deterministically outside the kernel and fed in.
    noise = jax.random.normal(k_n, (B, COND_DIM), dtype=jnp.float32)

    r_cond, r_mean, r_sigma = _reference(x, w, b, noise)

    # 1) Single-grid-step path (tile == exact batch, no padding).
    cond, mean, sigma = cond_augment_forward(x, w, b, noise)
    jax.block_until_ready((cond, mean, sigma))
    assert jnp.allclose(cond, r_cond, atol=1e-3, rtol=1e-3)
    assert jnp.allclose(mean, r_mean, atol=1e-3, rtol=1e-3)
    assert jnp.allclose(sigma, r_sigma, atol=1e-3, rtol=1e-3)

    # 2) Multi-step batch grid, evenly divisible (resident weights + pipelining).
    cond2, mean2, sigma2 = cond_augment_forward(x, w, b, noise, tile_b=8)
    jax.block_until_ready((cond2, mean2, sigma2))
    assert jnp.allclose(cond2, r_cond, atol=1e-3, rtol=1e-3)
    assert jnp.allclose(mean2, r_mean, atol=1e-3, rtol=1e-3)
    assert jnp.allclose(sigma2, r_sigma, atol=1e-3, rtol=1e-3)

    # 3) Ragged multi-step path: 24 rows / tile 16 -> partial final block,
    #    exercising Pallas masking instead of a wrapper-side pad.
    cond3, mean3, sigma3 = cond_augment_forward(x, w, b, noise, tile_b=16)
    jax.block_until_ready((cond3, mean3, sigma3))
    assert jnp.allclose(cond3, r_cond, atol=1e-3, rtol=1e-3)
    assert jnp.allclose(mean3, r_mean, atol=1e-3, rtol=1e-3)
    assert jnp.allclose(sigma3, r_sigma, atol=1e-3, rtol=1e-3)

    # 4) bf16-output path for bf16 downstream consumers (looser tolerance).
    cond4, mean4, sigma4 = cond_augment_forward(x, w, b, noise,
                                                out_dtype=jnp.bfloat16)
    jax.block_until_ready((cond4, mean4, sigma4))
    assert jnp.allclose(cond4.astype(jnp.float32), r_cond, atol=3e-2, rtol=3e-2)

    print("KERNEL_OK")
</pallas_src>

<mosaic_0001>
module attributes {stable_mosaic.version = 11 : i64} {
  func.func @_cond_augment_kernel(%arg0: i32, %arg1: memref<24x256xbf16, #tpu.memory_space<vmem>>, %arg2: memref<256x256xbf16, #tpu.memory_space<vmem>>, %arg3: memref<1x256xf32, #tpu.memory_space<vmem>>, %arg4: memref<24x128xbf16, #tpu.memory_space<vmem>>, %arg5: memref<24x128xf32, #tpu.memory_space<vmem>>, %arg6: memref<24x128xf32, #tpu.memory_space<vmem>>, %arg7: memref<24x128xf32, #tpu.memory_space<vmem>>) attributes {dimension_semantics = [#tpu.dimension_semantics<parallel>], iteration_bounds = array<i64: 1>, scalar_prefetch = 0 : i64, scratch_operands = 0 : i64, tpu.core_type = #tpu.core_type<tc>, window_params = [{transform_indices = @transform_0, window_bounds = array<i64: 24, 256>}, {pipeline_mode = #tpu.pipeline_mode<synchronous>, transform_indices = @transform_1, window_bounds = array<i64: 256, 256>}, {pipeline_mode = #tpu.pipeline_mode<synchronous>, transform_indices = @transform_2, window_bounds = array<i64: 1, 256>}, {transform_indices = @transform_3, window_bounds = array<i64: 24, 128>}, {transform_indices = @transform_4, window_bounds = array<i64: 24, 128>}, {transform_indices = @transform_5, window_bounds = array<i64: 24, 128>}, {transform_indices = @transform_6, window_bounds = array<i64: 24, 128>}]} {
    %c0 = arith.constant 0 : index
    %c0_0 = arith.constant 0 : index
    %0 = vector.load %arg1[%c0, %c0_0] : memref<24x256xbf16, #tpu.memory_space<vmem>>, vector<24x256xbf16>
    %c0_1 = arith.constant 0 : index
    %c0_2 = arith.constant 0 : index
    %1 = vector.load %arg2[%c0_1, %c0_2] : memref<256x256xbf16, #tpu.memory_space<vmem>>, vector<256x256xbf16>
    %cst = arith.constant dense<0.000000e+00> : vector<24x256xf32>
    %2 = tpu.matmul %0, %1, %cst {dimension_numbers = #tpu.dot_dimension_numbers<[1], [0], [0], [1], [0, 0, 1, 1], [], []>} : vector<24x256xbf16>, vector<256x256xbf16>, vector<24x256xf32> -> vector<24x256xf32>
    %c0_3 = arith.constant 0 : index
    %c0_4 = arith.constant 0 : index
    %3 = vector.load %arg3[%c0_3, %c0_4] : memref<1x256xf32, #tpu.memory_space<vmem>>, vector<1x256xf32>
    %4 = vector.broadcast %3 : vector<1x256xf32> to vector<24x256xf32>
    %5 = arith.addf %2, %4 : vector<24x256xf32>
    %cst_5 = arith.constant 0.000000e+00 : f32
    %6 = vector.broadcast %cst_5 : f32 to vector<24x256xf32>
    %7 = arith.maximumf %5, %6 : vector<24x256xf32>
    %8 = vector.extract_strided_slice %7 {offsets = [0, 0], sizes = [24, 128], strides = [1, 1]} : vector<24x256xf32> to vector<24x128xf32>
    %9 = vector.extract_strided_slice %7 {offsets = [0, 128], sizes = [24, 128], strides = [1, 1]} : vector<24x256xf32> to vector<24x128xf32>
    %c0_6 = arith.constant 0 : index
    %c0_7 = arith.constant 0 : index
    %10 = vector.load %arg6[%c0_6, %c0_7] : memref<24x128xf32, #tpu.memory_space<vmem>>, vector<24x128xf32>
    tpu.vector_store %arg6[%c0_6, %c0_7], %8 {strides = array<i32>} : memref<24x128xf32, #tpu.memory_space<vmem>>, vector<24x128xf32>,
    %c0_8 = arith.constant 0 : index
    %c0_9 = arith.constant 0 : index
    %11 = vector.load %arg7[%c0_8, %c0_9] : memref<24x128xf32, #tpu.memory_space<vmem>>, vector<24x128xf32>
    tpu.vector_store %arg7[%c0_8, %c0_9], %9 {strides = array<i32>} : memref<24x128xf32, #tpu.memory_space<vmem>>, vector<24x128xf32>,
    %c0_10 = arith.constant 0 : index
    %c0_11 = arith.constant 0 : index
    %12 = vector.load %arg4[%c0_10, %c0_11] : memref<24x128xbf16, #tpu.memory_space<vmem>>, vector<24x128xbf16>
    %13 = arith.extf %12 : vector<24x128xbf16> to vector<24x128xf32>
    %cst_12 = arith.constant 5.000000e-01 : f32
    %14 = vector.broadcast %cst_12 : f32 to vector<24x128xf32>
    %15 = arith.mulf %9, %14 : vector<24x128xf32>
    %16 = math.exp %15 : vector<24x128xf32>
    %17 = arith.mulf %16, %13 : vector<24x128xf32>
    %18 = arith.addf %17, %8 : vector<24x128xf32>
    %c0_13 = arith.constant 0 : index
    %c0_14 = arith.constant 0 : index
    %19 = vector.load %arg5[%c0_13, %c0_14] : memref<24x128xf32, #tpu.memory_space<vmem>>, vector<24x128xf32>
    tpu.vector_store %arg5[%c0_13, %c0_14], %18 {strides = array<i32>} : memref<24x128xf32, #tpu.memory_space<vmem>>, vector<24x128xf32>,
    return
  }
  func.func @transform_0(%arg0: i32) -> (i32, i32) {
    %c0_i32 = arith.constant 0 : i32
    %c0_i32_0 = arith.constant 0 : i32
    return %arg0, %c0_i32 : i32, i32
  }
  func.func @transform_1(%arg0: i32) -> (i32, i32) {
    %c0_i32 = arith.constant 0 : i32
    %c0_i32_0 = arith.constant 0 : i32
    %c0_i32_1 = arith.constant 0 : i32
    return %c0_i32, %c0_i32_0 : i32, i32
  }
  func.func @transform_2(%arg0: i32) -> (i32, i32) {
    %c0_i32 = arith.constant 0 : i32
    %c0_i32_0 = arith.constant 0 : i32
    %c0_i32_1 = arith.constant 0 : i32
    return %c0_i32, %c0_i32_0 : i32, i32
  }
  func.func @transform_3(%arg0: i32) -> (i32, i32) {
    %c0_i32 = arith.constant 0 : i32
    %c0_i32_0 = arith.constant 0 : i32
    return %arg0, %c0_i32 : i32, i32
  }
  func.func @transform_4(%arg0: i32) -> (i32, i32) {
    %c0_i32 = arith.constant 0 : i32
    %c0_i32_0 = arith.constant 0 : i32
    return %arg0, %c0_i32 : i32, i32
  }
  func.func @transform_5(%arg0: i32) -> (i32, i32) {
    %c0_i32 = arith.constant 0 : i32
    %c0_i32_0 = arith.constant 0 : i32
    return %arg0, %c0_i32 : i32, i32
  }
  func.func @transform_6(%arg0: i32) -> (i32, i32) {
    %c0_i32 = arith.constant 0 : i32
    %c0_i32_0 = arith.constant 0 : i32
    return %arg0, %c0_i32 : i32, i32
  }
}

</mosaic_0001>

<llo_original>
// kernel: tpu_custom_call.1
$region0: #{tpu_custom_call.1}
  #allocation0 [shape = 'u32[]', space=smem, size = 0x4, offset = 0x4, fixed_abs, tag = 'smem constant byte address 0x4 - core index']
  #allocation1 [shape = 'u32[144,128]{1,0:T(1,128)}', space=vmem, size = 0x12000, scoped, tag = 'internal scratch']
  %s0 = inlined_call_operand.hbm [shape: bf16[24,256], index: 0, kind: input, shape index: {}]
  %s1 = inlined_call_operand.hbm [shape: bf16[256,256], index: 1, kind: input, shape index: {}]
  %s2 = inlined_call_operand.vmem [shape: f32[1,256], index: 2, kind: input, shape index: {}]
  %s3 = inlined_call_operand.hbm [shape: bf16[24,128], index: 3, kind: input, shape index: {}]
  %s4 = inlined_call_operand.hbm [shape: f32[24,128], index: 4, kind: output, shape index: {0}]
  %s5 = inlined_call_operand.hbm [shape: f32[24,128], index: 5, kind: output, shape index: {1}]
  %s6 = inlined_call_operand.hbm [shape: f32[24,128], index: 6, kind: output, shape index: {2}]
  %7 = xla_tuple %s4, %s5, %s6
  %s8 = sld [smem:[#allocation0]]
  $region54: #{tpu_custom_call.1} parent=0
    _
  %s10 = ssub.s32 1, %s8
  %s11 = scalar_select 0, %s10, %s8
  $region1: #{tpu_custom_call.1} parent=0
    #allocation2 [shape = 'u8[12288]{0}', space=vmem, size = 0x3000, scoped, tag = 'input window, operand 0, single buffered']
    #allocation3 [shape = 's32[1]{0}', space=sflag, size = 0x4, scoped, tag = 'scoped memory for tpu_custom_call.1']
    #allocation4 [shape = 's32[1]{0}', space=sflag, size = 0x4, scoped, tag = 'scoped memory for tpu_custom_call.1']
    #allocation5 [shape = 'u8[131072]{0}', space=vmem, size = 0x20000, scoped, tag = 'input window, operand 1, single buffered']
    #allocation6 [shape = 's32[1]{0}', space=sflag, size = 0x4, scoped, tag = 'scoped memory for tpu_custom_call.1']
    #allocation7 [shape = 'u8[6144]{0}', space=vmem, size = 0x1800, scoped, tag = 'input window, operand 3, single buffered']
    #allocation8 [shape = 'u8[12288]{0}', space=vmem, size = 0x3000, scoped, tag = 'output window, operand 0, single buffered']
    #allocation9 [shape = 'u8[12288]{0}', space=vmem, size = 0x3000, scoped, tag = 'output window, operand 1, single buffered']
    #allocation10 [shape = 's32[1]{0}', space=sflag, size = 0x4, scoped, tag = 'scoped memory for tpu_custom_call.1']
    #allocation11 [shape = 'u8[12288]{0}', space=vmem, size = 0x3000, scoped, tag = 'output window, operand 2, single buffered']
    %12 = vsyncpa [#allocation3], 0
    %13 = vsyncpa [#allocation6], 0
    %14 = vsyncpa [#allocation4], 0
    %15 = vsyncpa [#allocation10], 0
    // Predicated region
    $region2: #{tpu_custom_call.1} parent=1 // pred_check
      _
    $region3: #{tpu_custom_call.1} parent=1 // pred_check_branch
      %17 = sbr.rel (0) target = $region5
    $region4: #{tpu_custom_call.1} parent=1 // pred_region
      %s19 = ssub.s32 384, 384
      %20 = vsyncadd [#allocation3], %s19
      %s21 = sshll.u32 [#allocation2], 4
      %s22 = int_to_ptr.vmem [resolvable:$true] %s21
      %27 = dma.hbm_to_vmem [thread:$0]  %s0, 384, %s22, [#allocation3], 128, 128, 8
    $region5: #{tpu_custom_call.1} parent=1 // pred_fallthru
      _
    // Predicated region
    $region6: #{tpu_custom_call.1} parent=1 // pred_check
      _
    $region7: #{tpu_custom_call.1} parent=1 // pred_check_branch
      %29 = sbr.rel (0) target = $region9
    $region8: #{tpu_custom_call.1} parent=1 // pred_region
      %s31 = ssub.s32 4096, 4096
      %32 = vsyncadd [#allocation6], %s31
      %s33 = sshll.u32 [#allocation5], 4
      %s34 = int_to_ptr.vmem [resolvable:$true] %s33
      %39 = dma.hbm_to_vmem [thread:$0]  %s1, 4096, %s34, [#allocation6], 128, 128, 8
    $region9: #{tpu_custom_call.1} parent=1 // pred_fallthru
      _
    // Predicated region
    $region10: #{tpu_custom_call.1} parent=1 // pred_check
      _
    $region11: #{tpu_custom_call.1} parent=1 // pred_check_branch
      %41 = sbr.rel (0) target = $region13
    $region12: #{tpu_custom_call.1} parent=1 // pred_region
      _
    $region13: #{tpu_custom_call.1} parent=1 // pred_fallthru
      _
    // Predicated region
    $region14: #{tpu_custom_call.1} parent=1 // pred_check
      _
    $region15: #{tpu_custom_call.1} parent=1 // pred_check_branch
      %43 = sbr.rel (0) target = $region17
    $region16: #{tpu_custom_call.1} parent=1 // pred_region
      %s45 = ssub.s32 192, 192
      %46 = vsyncadd [#allocation6], %s45
      %s47 = sshll.u32 [#allocation7], 4
      %s48 = int_to_ptr.vmem [resolvable:$true] %s47
      %53 = dma.hbm_to_vmem [thread:$0]  %s3, 192, %s48, [#allocation6], 64, 64, 4
    $region17: #{tpu_custom_call.1} parent=1 // pred_fallthru
      _
    // Predicated region
    $region18: #{tpu_custom_call.1} parent=1 // pred_check
      _
    $region19: #{tpu_custom_call.1} parent=1 // pred_check_branch
      %55 = sbr.rel (0) target = $region21
    $region20: #{tpu_custom_call.1} parent=1 // pred_region
      %56 = dma.done [#allocation3], 384
    $region21: #{tpu_custom_call.1} parent=1 // pred_fallthru
      _
    // Predicated region
    $region22: #{tpu_custom_call.1} parent=1 // pred_check
      _
    $region23: #{tpu_custom_call.1} parent=1 // pred_check_branch
      %58 = sbr.rel (0) target = $region25
    $region24: #{tpu_custom_call.1} parent=1 // pred_region
      %59 = dma.done [#allocation6], 4096
    $region25: #{tpu_custom_call.1} parent=1 // pred_fallthru
      _
    // Predicated region
    $region26: #{tpu_custom_call.1} parent=1 // pred_check
      _
    $region27: #{tpu_custom_call.1} parent=1 // pred_check_branch
      %61 = sbr.rel (0) target = $region29
    $region28: #{tpu_custom_call.1} parent=1 // pred_region
      %62 = dma.done [#allocation6], 192
    $region29: #{tpu_custom_call.1} parent=1 // pred_fallthru
      _
    %v63 = vld [vmem:[#allocation2] sm:$0xff]
    %v64 = vld [vmem:[#allocation2 + $0x8] sm:$0xff]
    %v65 = vld [vmem:[#allocation2 + $0x10] sm:$0xff]
    %v66 = vld [vmem:[#allocation5] sm:$0xff]
    %v67 = vld [vmem:[#allocation5 + $0x8] sm:$0xff]
    %v68 = vld [vmem:[#allocation5 + $0x10] sm:$0xff]
    %v69 = vld [vmem:[#allocation5 + $0x18] sm:$0xff]
    %v70 = vld [vmem:[#allocation5 + $0x20] sm:$0xff]
    %v71 = vld [vmem:[#allocation5 + $0x28] sm:$0xff]
    %v72 = vld [vmem:[#allocation5 + $0x30] sm:$0xff]
    %v73 = vld [vmem:[#allocation5 + $0x38] sm:$0xff]
    %v74 = vld [vmem:[#allocation5 + $0x40] sm:$0xff]
    %v75 = vld [vmem:[#allocation5 + $0x48] sm:$0xff]
    %v76 = vld [vmem:[#allocation5 + $0x50] sm:$0xff]
    %v77 = vld [vmem:[#allocation5 + $0x58] sm:$0xff]
    %v78 = vld [vmem:[#allocation5 + $0x60] sm:$0xff]
    %v79 = vld [vmem:[#allocation5 + $0x68] sm:$0xff]
    %v80 = vld [vmem:[#allocation5 + $0x70] sm:$0xff]
    %v81 = vld [vmem:[#allocation5 + $0x78] sm:$0xff]
    %v82 = vld [vmem:[#allocation5 + $0x80] sm:$0xff]
    %v83 = vld [vmem:[#allocation5 + $0x88] sm:$0xff]
    %v84 = vld [vmem:[#allocation5 + $0x90] sm:$0xff]
    %v85 = vld [vmem:[#allocation5 + $0x98] sm:$0xff]
    %v86 = vld [vmem:[#allocation5 + $0xa0] sm:$0xff]
    %v87 = vld [vmem:[#allocation5 + $0xa8] sm:$0xff]
    %v88 = vld [vmem:[#allocation5 + $0xb0] sm:$0xff]
    %v89 = vld [vmem:[#allocation5 + $0xb8] sm:$0xff]
    %v90 = vld [vmem:[#allocation5 + $0xc0] sm:$0xff]
    %v91 = vld [vmem:[#allocation5 + $0xc8] sm:$0xff]
    %v92 = vld [vmem:[#allocation5 + $0xd0] sm:$0xff]
    %v93 = vld [vmem:[#allocation5 + $0xd8] sm:$0xff]
    %v94 = vld [vmem:[#allocation5 + $0xe0] sm:$0xff]
    %v95 = vld [vmem:[#allocation5 + $0xe8] sm:$0xff]
    %v96 = vld [vmem:[#allocation5 + $0xf0] sm:$0xff]
    %v97 = vld [vmem:[#allocation5 + $0xf8] sm:$0xff]
    %v98 = vld [vmem:[%s2] sm:$0x3]
    %v100 = vlaneseq
    %v101 = vshrl.u32 %v100, 7
    %v102 = vsub.s32 0, %v101
    %v103 = vrot.slane %v98, %v102
    %v104 = vlaneseq
    %v105 = vshrl.u32 %v104, 7
    %v106 = vsub.s32 1, %v105
    %v107 = vrot.slane %v98, %v106
    %v113 = vunpack.c.l.b16 %v63
    %v114 = vunpack.c.h.b16 %v63
    %v115 = vunpack.c.l.b16 %v64
    %v116 = vunpack.c.h.b16 %v64
    %v117 = vunpack.c.l.b16 %v65
    %v118 = vunpack.c.h.b16 %v65
    %v119 = vpack.c.b16 %v115, %v113
    %v120 = vpack.c.b16 %v116, %v114
    %v121 = vpack.c.b16 %v117, %v117
    %v122 = vpack.c.b16 %v118, %v118
    %v159 = vunpack.c.l.b16 %v66
    %v160 = vunpack.c.h.b16 %v66
    %v161 = vunpack.c.l.b16 %v67
    %v162 = vunpack.c.h.b16 %v67
    %v163 = vunpack.c.l.b16 %v68
    %v164 = vunpack.c.h.b16 %v68
    %v165 = vunpack.c.l.b16 %v69
    %v166 = vunpack.c.h.b16 %v69
    %v167 = vunpack.c.l.b16 %v70
    %v168 = vunpack.c.h.b16 %v70
    %v169 = vunpack.c.l.b16 %v71
    %v170 = vunpack.c.h.b16 %v71
    %v171 = vunpack.c.l.b16 %v72
    %v172 = vunpack.c.h.b16 %v72
    %v173 = vunpack.c.l.b16 %v73
    %v174 = vunpack.c.h.b16 %v73
    %v175 = vunpack.c.l.b16 %v74
    %v176 = vunpack.c.h.b16 %v74
    %v177 = vunpack.c.l.b16 %v75
    %v178 = vunpack.c.h.b16 %v75
    %v179 = vunpack.c.l.b16 %v76
    %v180 = vunpack.c.h.b16 %v76
    %v181 = vunpack.c.l.b16 %v77
    %v182 = vunpack.c.h.b16 %v77
    %v183 = vunpack.c.l.b16 %v78
    %v184 = vunpack.c.h.b16 %v78
    %v185 = vunpack.c.l.b16 %v79
    %v186 = vunpack.c.h.b16 %v79
    %v187 = vunpack.c.l.b16 %v80
    %v188 = vunpack.c.h.b16 %v80
    %v189 = vunpack.c.l.b16 %v81
    %v190 = vunpack.c.h.b16 %v81
    %v191 = vunpack.c.l.b16 %v82
    %v192 = vunpack.c.h.b16 %v82
    %v193 = vunpack.c.l.b16 %v83
    %v194 = vunpack.c.h.b16 %v83
    %v195 = vunpack.c.l.b16 %v84
    %v196 = vunpack.c.h.b16 %v84
    %v197 = vunpack.c.l.b16 %v85
    %v198 = vunpack.c.h.b16 %v85
    %v199 = vunpack.c.l.b16 %v86
    %v200 = vunpack.c.h.b16 %v86
    %v201 = vunpack.c.l.b16 %v87
    %v202 = vunpack.c.h.b16 %v87
    %v203 = vunpack.c.l.b16 %v88
    %v204 = vunpack.c.h.b16 %v88
    %v205 = vunpack.c.l.b16 %v89
    %v206 = vunpack.c.h.b16 %v89
    %v207 = vunpack.c.l.b16 %v90
    %v208 = vunpack.c.h.b16 %v90
    %v209 = vunpack.c.l.b16 %v91
    %v210 = vunpack.c.h.b16 %v91
    %v211 = vunpack.c.l.b16 %v92
    %v212 = vunpack.c.h.b16 %v92
    %v213 = vunpack.c.l.b16 %v93
    %v214 = vunpack.c.h.b16 %v93
    %v215 = vunpack.c.l.b16 %v94
    %v216 = vunpack.c.h.b16 %v94
    %v217 = vunpack.c.l.b16 %v95
    %v218 = vunpack.c.h.b16 %v95
    %v219 = vunpack.c.l.b16 %v96
    %v220 = vunpack.c.h.b16 %v96
    %v221 = vunpack.c.l.b16 %v97
    %v222 = vunpack.c.h.b16 %v97
    %v223 = vpack.c.b16 %v161, %v159
    %v224 = vpack.c.b16 %v162, %v160
    %v225 = vpack.c.b16 %v165, %v163
    %v226 = vpack.c.b16 %v166, %v164
    %v227 = vpack.c.b16 %v169, %v167
    %v228 = vpack.c.b16 %v170, %v168
    %v229 = vpack.c.b16 %v173, %v171
    %v230 = vpack.c.b16 %v174, %v172
    %v231 = vpack.c.b16 %v177, %v175
    %v232 = vpack.c.b16 %v178, %v176
    %v233 = vpack.c.b16 %v181, %v179
    %v234 = vpack.c.b16 %v182, %v180
    %v235 = vpack.c.b16 %v185, %v183
    %v236 = vpack.c.b16 %v186, %v184
    %v237 = vpack.c.b16 %v189, %v187
    %v238 = vpack.c.b16 %v190, %v188
    %v239 = vpack.c.b16 %v193, %v191
    %v240 = vpack.c.b16 %v194, %v192
    %v241 = vpack.c.b16 %v197, %v195
    %v242 = vpack.c.b16 %v198, %v196
    %v243 = vpack.c.b16 %v201, %v199
    %v244 = vpack.c.b16 %v202, %v200
    %v245 = vpack.c.b16 %v205, %v203
    %v246 = vpack.c.b16 %v206, %v204
    %v247 = vpack.c.b16 %v209, %v207
    %v248 = vpack.c.b16 %v210, %v208
    %v249 = vpack.c.b16 %v213, %v211
    %v250 = vpack.c.b16 %v214, %v212
    %v251 = vpack.c.b16 %v217, %v215
    %v252 = vpack.c.b16 %v218, %v216
    %v253 = vpack.c.b16 %v221, %v219
    %v254 = vpack.c.b16 %v222, %v220
    %287 = vmatprep.subr.bf16.mxu0 %v224
    %288 = vmatpush1.bf16.msra.mxu0 %v223
    %289 = vmatprep.subr.bf16.mxu0 %v226
    %290 = vmatpush1.bf16.msra.mxu0 %v225
    %291 = vmatprep.subr.bf16.mxu0 %v228
    %292 = vmatpush1.bf16.msra.mxu0 %v227
    %293 = vmatprep.subr.bf16.mxu0 %v230
    %294 = vmatpush1.bf16.msra.mxu0 %v229
    %295 = vmatprep.subr.bf16.mxu0 %v232
    %296 = vmatpush1.bf16.msra.mxu0 %v231
    %297 = vmatprep.subr.bf16.mxu0 %v234
    %298 = vmatpush1.bf16.msra.mxu0 %v233
    %299 = vmatprep.subr.bf16.mxu0 %v236
    %300 = vmatpush1.bf16.msra.mxu0 %v235
    %301 = vmatprep.subr.bf16.mxu0 %v238
    %302 = vmatpush1.bf16.msra.mxu0 %v237
    %303 = vmatprep.subr.bf16.mxu0 %v240
    %304 = vmatpush1.bf16.msra.mxu0 %v239
    %305 = vmatprep.subr.bf16.mxu0 %v242
    %306 = vmatpush1.bf16.msra.mxu0 %v241
    %307 = vmatprep.subr.bf16.mxu0 %v244
    %308 = vmatpush1.bf16.msra.mxu0 %v243
    %309 = vmatprep.subr.bf16.mxu0 %v246
    %310 = vmatpush1.bf16.msra.mxu0 %v245
    %311 = vmatprep.subr.bf16.mxu0 %v248
    %312 = vmatpush1.bf16.msra.mxu0 %v247
    %313 = vmatprep.subr.bf16.mxu0 %v250
    %314 = vmatpush1.bf16.msra.mxu0 %v249
    %315 = vmatprep.subr.bf16.mxu0 %v252
    %316 = vmatpush1.bf16.msra.mxu0 %v251
    %317 = vmatprep.subr.bf16.mxu0 %v254
    %318 = vmatpush1.bf16.msra.mxu0 %v253
    %319 = vmatprep.mubr.bf16.mxu0 %v120
    %320 = vmatmul.mubr.bf16.gmra.mrb[0].mxu0 %v119
    %v321 = vpop.f32.mrb[0].mxu0
    %v322 = vadd.f32 %v103, %v321
    %v323 = vpop.f32.mrb[0].mxu0
    %v324 = vadd.f32 %v107, %v323
    %v325 = vpop.f32.mrb[0].mxu0
    %v326 = vadd.f32 %v103, %v325
    %v327 = vpop.f32.mrb[0].mxu0
    %v328 = vadd.f32 %v107, %v327
    %329 = vmatprep.mubr.bf16.mxu0 %v122
    %330 = vmatmul.mubr.bf16.gmra.mrb[0].mxu0 %v121
    %v331 = vpop.f32.mrb[0].mxu0
    %v332 = vadd.f32 %v103, %v331
    %v333 = vpop.f32.mrb[0].mxu0
    %v334 = vadd.f32 %v107, %v333
    %v335 = vpop.f32.mrb[0].mxu0
    %v336 = vpop.f32.mrb[0].mxu0
    %337 = vdwg.mxu0
    %v338 = vmax.f32 %v322, 0.0
    %v339 = vmax.f32 %v324, 0.0
    %v340 = vmax.f32 %v326, 0.0
    %v341 = vmax.f32 %v328, 0.0
    %v342 = vmax.f32 %v332, 0.0
    %v343 = vmax.f32 %v334, 0.0
    %344 = vst [vmem:[#allocation9] sm:$0xff] %v338
    %345 = vst [vmem:[#allocation9 + $0x8] sm:$0xff] %v340
    %346 = vst [vmem:[#allocation9 + $0x10] sm:$0xff] %v342
    %347 = vst [vmem:[#allocation11] sm:$0xff] %v339
    %348 = vst [vmem:[#allocation11 + $0x8] sm:$0xff] %v341
    %349 = vst [vmem:[#allocation11 + $0x10] sm:$0xff] %v343
    %v350 = vld [vmem:[#allocation7] sm:$0xf]
    %v351 = vld [vmem:[#allocation7 + $0x4] sm:$0xf]
    %v352 = vld [vmem:[#allocation7 + $0x8] sm:$0xf]
    %v353 = vunpack.c.l.bf16 %v350
    %v354 = vunpack.c.l.bf16 %v351
    %v355 = vunpack.c.l.bf16 %v352
    %v356 = vmul.f32 %v339, 0.5
    %v357 = vmul.f32 %v341, 0.5
    %v358 = vmul.f32 %v343, 0.5
    %v359 = vmul.f32 %v356, 1.442695
    %v360 = vpow.pop %v359
    %v361 = vmul.f32 %v357, 1.442695
    %v362 = vpow.pop %v361
    %v363 = vmul.f32 %v358, 1.442695
    %v364 = vpow.pop %v363
    %v365 = vmul.f32 %v360, %v353
    %v366 = vmul.f32 %v362, %v354
    %v367 = vmul.f32 %v364, %v355
    %v368 = vadd.f32 %v365, %v338
    %v369 = vadd.f32 %v366, %v340
    %v370 = vadd.f32 %v367, %v342
    %371 = vst [vmem:[#allocation8] sm:$0xff] %v368
    %372 = vst [vmem:[#allocation8 + $0x8] sm:$0xff] %v369
    %373 = vst [vmem:[#allocation8 + $0x10] sm:$0xff] %v370
    // Predicated region
    $region30: #{tpu_custom_call.1} parent=1 // pred_check
      _
    $region31: #{tpu_custom_call.1} parent=1 // pred_check_branch
      %375 = sbr.rel (0) target = $region33
    $region32: #{tpu_custom_call.1} parent=1 // pred_region
      %s377 = ssub.s32 384, 384
      %378 = vsyncadd [#allocation4], %s377
      %s379 = sshll.u32 [#allocation8], 4
      %s380 = int_to_ptr.vmem [resolvable:$true] %s379
      %385 = dma.vmem_to_hbm [thread:$0]  %s380, 384, %s4, [#allocation4], 128, 128, 8
    $region33: #{tpu_custom_call.1} parent=1 // pred_fallthru
      _
    // Predicated region
    $region34: #{tpu_custom_call.1} parent=1 // pred_check
      _
    $region35: #{tpu_custom_call.1} parent=1 // pred_check_branch
      %387 = sbr.rel (0) target = $region37
    $region36: #{tpu_custom_call.1} parent=1 // pred_region
      %s389 = ssub.s32 384, 384
      %390 = vsyncadd [#allocation10], %s389
      %s391 = sshll.u32 [#allocation9], 4
      %s392 = int_to_ptr.vmem [resolvable:$true] %s391
      %397 = dma.vmem_to_hbm [thread:$0]  %s392, 384, %s5, [#allocation10], 128, 128, 8
    $region37: #{tpu_custom_call.1} parent=1 // pred_fallthru
      _
    // Predicated region
    $region38: #{tpu_custom_call.1} parent=1 // pred_check
      _
    $region39: #{tpu_custom_call.1} parent=1 // pred_check_branch
      %399 = sbr.rel (0) target = $region41
    $region40: #{tpu_custom_call.1} parent=1 // pred_region
      %s401 = ssub.s32 384, 384
      %402 = vsyncadd [#allocation10], %s401
      %s403 = sshll.u32 [#allocation11], 4
      %s404 = int_to_ptr.vmem [resolvable:$true] %s403
      %409 = dma.vmem_to_hbm [thread:$0]  %s404, 384, %s6, [#allocation10], 128, 128, 8
    $region41: #{tpu_custom_call.1} parent=1 // pred_fallthru
      _
    // Predicated region
    $region42: #{tpu_custom_call.1} parent=1 // pred_check
      _
    $region43: #{tpu_custom_call.1} parent=1 // pred_check_branch
      %411 = sbr.rel (0) target = $region45
    $region44: #{tpu_custom_call.1} parent=1 // pred_region
      %412 = dma.done [#allocation4], 384
    $region45: #{tpu_custom_call.1} parent=1 // pred_fallthru
      _
    // Predicated region
    $region46: #{tpu_custom_call.1} parent=1 // pred_check
      _
    $region47: #{tpu_custom_call.1} parent=1 // pred_check_branch
      %414 = sbr.rel (0) target = $region49
    $region48: #{tpu_custom_call.1} parent=1 // pred_region
      %415 = dma.done [#allocation10], 384
    $region49: #{tpu_custom_call.1} parent=1 // pred_fallthru
      _
    // Predicated region
    $region50: #{tpu_custom_call.1} parent=1 // pred_check
      _
    $region51: #{tpu_custom_call.1} parent=1 // pred_check_branch
      %417 = sbr.rel (0) target = $region53
    $region52: #{tpu_custom_call.1} parent=1 // pred_region
      %418 = dma.done [#allocation10], 384
    $region53: #{tpu_custom_call.1} parent=1 // pred_fallthru
      _
    %419 = vsyncpa [#allocation3], 1
    %420 = vsyncpa [#allocation6], 1
    %421 = vsyncpa [#allocation4], 1
    %422 = vsyncpa [#allocation10], 1

</llo_original>
